<compile_context>
chip_gen: v7x
topology: tpu7x:2x2x1
jax: 0.10.0
libtpu: 0.0.40
codegen_flags: <defaults>
</compile_context>

<pallas_src>
import jax
import jax.numpy as jnp
from jax.experimental import pallas as pl
from jax.experimental.pallas import tpu as pltpu


# ------------------------- fused BPR propagation kernel ---------------------
def _bpr_fused_kernel(ui_ref, iu_ref, eu_ref, ei_ref, o_ref):
    """Fully fused, weight-folded BPR item-embedding propagation.

    ui_ref : [U, I]  user->item propagation matrix (compute dtype)
    iu_ref : [I, U]  item->user propagation matrix (compute dtype)
    eu_ref : [U, F]  user embeddings (compute dtype)
    ei_ref : [I, F]  item embeddings (f32, residual precision)
    o_ref  : [I, F]  gcn_items_embedding (f32)
    """
    f32 = jnp.float32
    cdt = ui_ref.dtype  # MXU input dtype (f32 or bf16)

    ui = ui_ref[...]          # [U, I]
    iu = iu_ref[...]          # [I, U]
    eu = eu_ref[...]          # [U, F]
    ei = ei_ref[...]          # [I, F]  (f32)

    # dot 1: gcn1_items = IU @ eu
    g1i = jnp.dot(iu, eu, preferred_element_type=f32)                 # [I, F]

    # Fold the user-side weights: UI @ (1/3*ei + 1/4*g1i) == 1/3*g1u + 1/4*g2u
    mix = ((1.0 / 3.0) * ei + 0.25 * g1i).astype(cdt)                 # [I, F]
    # dot 2
    user_rhs = (0.5 * eu.astype(f32)
                + jnp.dot(ui, mix, preferred_element_type=f32))       # [U, F]

    # Fold the item-side weights: out = ei + IU @ user_rhs
    # dot 3
    out = ei + jnp.dot(iu, user_rhs.astype(cdt),
                       preferred_element_type=f32)                    # [I, F]
    o_ref[...] = out.astype(o_ref.dtype)


# ------------------------------- BPR forward --------------------------------
def bpr_forward(embed_user, embed_item, user_item_matrix, item_user_matrix,
                *, compute_dtype=jnp.float32):
    """Matches BPR.forward: returns gcn_items_embedding, shape [item_num, F].

    One fused pallas_call, one grid step: inputs are DMA'd to VMEM once, the
    folded 3-matmul chain + residual add runs on-chip, only the final [I, F]
    result goes back to HBM.  Pass compute_dtype=jnp.bfloat16 to feed the MXU
    bf16 (accumulation and the embed_item residual stay f32).
    """
    U, I = user_item_matrix.shape
    I2, U2 = item_user_matrix.shape
    Ue, F = embed_user.shape
    Ie, F2 = embed_item.shape
    assert I == I2 and U == U2 and U == Ue and I == Ie and F == F2

    ui = user_item_matrix.astype(compute_dtype)
    iu = item_user_matrix.astype(compute_dtype)
    eu = embed_user.astype(compute_dtype)
    ei = embed_item.astype(jnp.float32)   # residual kept in f32 always

    flops = int(6 * U * I * F)            # 3 dots: 2*U*I*F each
    bytes_accessed = int(ui.size * ui.dtype.itemsize
                         + iu.size * iu.dtype.itemsize
                         + eu.size * eu.dtype.itemsize
                         + ei.size * ei.dtype.itemsize
                         + I * F * 4)

    def full_spec(shape):
        return pl.BlockSpec(shape, lambda i: (0, 0))

    return pl.pallas_call(
        _bpr_fused_kernel,
        out_shape=jax.ShapeDtypeStruct((I, F), jnp.float32),
        grid_spec=pltpu.PrefetchScalarGridSpec(
            num_scalar_prefetch=0,
            grid=(1,),
            in_specs=[
                full_spec((U, I)),   # user_item_matrix
                full_spec((I, U)),   # item_user_matrix
                full_spec((U, F)),   # embed_user
                full_spec((I, F)),   # embed_item (f32)
            ],
            out_specs=full_spec((I, F)),
        ),
        compiler_params=pltpu.CompilerParams(
            dimension_semantics=("arbitrary",)),
        cost_estimate=pl.CostEstimate(
            flops=flops, transcendentals=0, bytes_accessed=bytes_accessed),
    )(ui, iu, eu, ei)


# ----------------------------------- main -----------------------------------
if __name__ == "__main__":
    user_num, item_num, factor_num = 128, 256, 128

    key = jax.random.PRNGKey(0)
    k_ui, k_eu, k_ei = jax.random.split(key, 3)

    # Deterministic synthetic bipartite adjacency (dense stand-in for sparse),
    # row-normalized like a typical GCN propagation matrix.
    ui_mask = (jax.random.uniform(k_ui, (user_num, item_num)) < 0.1
               ).astype(jnp.float32)
    ui_deg = jnp.maximum(ui_mask.sum(axis=1, keepdims=True), 1.0)
    user_item_matrix = ui_mask / ui_deg                              # [U, I]
    iu_deg = jnp.maximum(ui_mask.sum(axis=0, keepdims=True), 1.0).T
    item_user_matrix = ui_mask.T / iu_deg                            # [I, U]

    embed_user = jax.random.normal(k_eu, (user_num, factor_num), jnp.float32)
    embed_item = jax.random.normal(k_ei, (item_num, factor_num), jnp.float32)

    # f32 compute path (strict check against the pure-JAX reference).
    out = bpr_forward(embed_user, embed_item,
                      user_item_matrix, item_user_matrix)
    out = jax.block_until_ready(out)

    # Pure-JAX reference (same op order as the PyTorch module).
    g1u = user_item_matrix @ embed_item
    g1i = item_user_matrix @ embed_user
    g2u = user_item_matrix @ g1i
    g2i = item_user_matrix @ g1u
    g3i = item_user_matrix @ g2u
    ref = embed_item + 0.5 * g1i + (1.0 / 3.0) * g2i + 0.25 * g3i
    assert out.shape == (item_num, factor_num)
    assert jnp.allclose(out, ref, atol=1e-4, rtol=1e-4)

    # bf16 MXU-input path (f32 accumulation + f32 residual), loose tolerance.
    out_bf16 = bpr_forward(embed_user, embed_item,
                           user_item_matrix, item_user_matrix,
                           compute_dtype=jnp.bfloat16)
    out_bf16 = jax.block_until_ready(out_bf16)
    assert jnp.allclose(out_bf16, ref, atol=1e-1, rtol=1e-1)

    print("KERNEL_OK")
</pallas_src>

<mosaic_0001>
module attributes {stable_mosaic.version = 11 : i64} {
  func.func @_bpr_fused_kernel(%arg0: i32, %arg1: memref<128x256xf32, #tpu.memory_space<vmem>>, %arg2: memref<256x128xf32, #tpu.memory_space<vmem>>, %arg3: memref<128x128xf32, #tpu.memory_space<vmem>>, %arg4: memref<256x128xf32, #tpu.memory_space<vmem>>, %arg5: memref<256x128xf32, #tpu.memory_space<vmem>>) attributes {dimension_semantics = [#tpu.dimension_semantics<arbitrary>], iteration_bounds = array<i64: 1>, scalar_prefetch = 0 : i64, scratch_operands = 0 : i64, tpu.core_type = #tpu.core_type<tc>, window_params = [{pipeline_mode = #tpu.pipeline_mode<synchronous>, transform_indices = @transform_0, window_bounds = array<i64: 128, 256>}, {pipeline_mode = #tpu.pipeline_mode<synchronous>, transform_indices = @transform_1, window_bounds = array<i64: 256, 128>}, {pipeline_mode = #tpu.pipeline_mode<synchronous>, transform_indices = @transform_2, window_bounds = array<i64: 128, 128>}, {pipeline_mode = #tpu.pipeline_mode<synchronous>, transform_indices = @transform_3, window_bounds = array<i64: 256, 128>}, {pipeline_mode = #tpu.pipeline_mode<synchronous>, transform_indices = @transform_4, window_bounds = array<i64: 256, 128>}]} {
    %c0 = arith.constant 0 : index
    %c0_0 = arith.constant 0 : index
    %0 = vector.load %arg1[%c0, %c0_0] : memref<128x256xf32, #tpu.memory_space<vmem>>, vector<128x256xf32>
    %c0_1 = arith.constant 0 : index
    %c0_2 = arith.constant 0 : index
    %1 = vector.load %arg2[%c0_1, %c0_2] : memref<256x128xf32, #tpu.memory_space<vmem>>, vector<256x128xf32>
    %c0_3 = arith.constant 0 : index
    %c0_4 = arith.constant 0 : index
    %2 = vector.load %arg3[%c0_3, %c0_4] : memref<128x128xf32, #tpu.memory_space<vmem>>, vector<128x128xf32>
    %c0_5 = arith.constant 0 : index
    %c0_6 = arith.constant 0 : index
    %3 = vector.load %arg4[%c0_5, %c0_6] : memref<256x128xf32, #tpu.memory_space<vmem>>, vector<256x128xf32>
    %cst = arith.constant dense<0.000000e+00> : vector<256x128xf32>
    %4 = tpu.matmul %1, %2, %cst {dimension_numbers = #tpu.dot_dimension_numbers<[1], [0], [0], [1], [0, 0, 1, 1], [], []>} : vector<256x128xf32>, vector<128x128xf32>, vector<256x128xf32> -> vector<256x128xf32>
    %cst_7 = arith.constant 0.333333343 : f32
    %5 = vector.broadcast %cst_7 : f32 to vector<256x128xf32>
    %6 = arith.mulf %5, %3 : vector<256x128xf32>
    %cst_8 = arith.constant 2.500000e-01 : f32
    %7 = vector.broadcast %cst_8 : f32 to vector<256x128xf32>
    %8 = arith.mulf %7, %4 : vector<256x128xf32>
    %9 = arith.addf %6, %8 : vector<256x128xf32>
    %cst_9 = arith.constant 5.000000e-01 : f32
    %10 = vector.broadcast %cst_9 : f32 to vector<128x128xf32>
    %11 = arith.mulf %10, %2 : vector<128x128xf32>
    %cst_10 = arith.constant dense<0.000000e+00> : vector<128x128xf32>
    %12 = tpu.matmul %0, %9, %cst_10 {dimension_numbers = #tpu.dot_dimension_numbers<[1], [0], [0], [1], [0, 0, 1, 1], [], []>} : vector<128x256xf32>, vector<256x128xf32>, vector<128x128xf32> -> vector<128x128xf32>
    %13 = arith.addf %11, %12 : vector<128x128xf32>
    %cst_11 = arith.constant dense<0.000000e+00> : vector<256x128xf32>
    %14 = tpu.matmul %1, %13, %cst_11 {dimension_numbers = #tpu.dot_dimension_numbers<[1], [0], [0], [1], [0, 0, 1, 1], [], []>} : vector<256x128xf32>, vector<128x128xf32>, vector<256x128xf32> -> vector<256x128xf32>
    %15 = arith.addf %3, %14 : vector<256x128xf32>
    %c0_12 = arith.constant 0 : index
    %c0_13 = arith.constant 0 : index
    %16 = vector.load %arg5[%c0_12, %c0_13] : memref<256x128xf32, #tpu.memory_space<vmem>>, vector<256x128xf32>
    tpu.vector_store %arg5[%c0_12, %c0_13], %15 {strides = array<i32>} : memref<256x128xf32, #tpu.memory_space<vmem>>, vector<256x128xf32>,
    return
  }
  func.func @transform_0(%arg0: i32) -> (i32, i32) {
    %c0_i32 = arith.constant 0 : i32
    %c0_i32_0 = arith.constant 0 : i32
    %c0_i32_1 = arith.constant 0 : i32
    return %c0_i32, %c0_i32_0 : i32, i32
  }
  func.func @transform_1(%arg0: i32) -> (i32, i32) {
    %c0_i32 = arith.constant 0 : i32
    %c0_i32_0 = arith.constant 0 : i32
    %c0_i32_1 = arith.constant 0 : i32
    return %c0_i32, %c0_i32_0 : i32, i32
  }
  func.func @transform_2(%arg0: i32) -> (i32, i32) {
    %c0_i32 = arith.constant 0 : i32
    %c0_i32_0 = arith.constant 0 : i32
    %c0_i32_1 = arith.constant 0 : i32
    return %c0_i32, %c0_i32_0 : i32, i32
  }
  func.func @transform_3(%arg0: i32) -> (i32, i32) {
    %c0_i32 = arith.constant 0 : i32
    %c0_i32_0 = arith.constant 0 : i32
    %c0_i32_1 = arith.constant 0 : i32
    return %c0_i32, %c0_i32_0 : i32, i32
  }
  func.func @transform_4(%arg0: i32) -> (i32, i32) {
    %c0_i32 = arith.constant 0 : i32
    %c0_i32_0 = arith.constant 0 : i32
    %c0_i32_1 = arith.constant 0 : i32
    return %c0_i32, %c0_i32_0 : i32, i32
  }
}

</mosaic_0001>

<llo_original>
// kernel: tpu_custom_call.1
$region0: #{tpu_custom_call.1}
  #allocation0 [shape = 'u32[]', space=smem, size = 0x4, offset = 0x4, fixed_abs, tag = 'smem constant byte address 0x4 - core index']
  #allocation1 [shape = 'u32[144,128]{1,0:T(1,128)}', space=vmem, size = 0x12000, scoped, tag = 'internal scratch']
  %s0 = inlined_call_operand.hbm [shape: f32[128,256], index: 0, kind: input, shape index: {}]
  %s1 = inlined_call_operand.hbm [shape: f32[256,128], index: 1, kind: input, shape index: {}]
  %s2 = inlined_call_operand.hbm [shape: f32[128,128], index: 2, kind: input, shape index: {}]
  %s3 = inlined_call_operand.hbm [shape: f32[256,128], index: 3, kind: input, shape index: {}]
  %s4 = inlined_call_operand.hbm [shape: f32[256,128], index: 4, kind: output, shape index: {}]
  %s5 = sld [smem:[#allocation0]]
  $region42: #{tpu_custom_call.1} parent=0
    _
  %s7 = ssub.s32 1, %s5
  %s8 = scalar_select 0, %s7, %s5
  $region1: #{tpu_custom_call.1} parent=0
    #allocation2 [shape = 'u8[131072]{0}', space=vmem, size = 0x20000, scoped, tag = 'input window, operand 0, single buffered']
    #allocation3 [shape = 's32[1]{0}', space=sflag, size = 0x4, scoped, tag = 'scoped memory for tpu_custom_call.1']
    #allocation4 [shape = 's32[1]{0}', space=sflag, size = 0x4, scoped, tag = 'scoped memory for tpu_custom_call.1']
    #allocation5 [shape = 'u8[131072]{0}', space=vmem, size = 0x20000, scoped, tag = 'input window, operand 1, single buffered']
    #allocation6 [shape = 's32[1]{0}', space=sflag, size = 0x4, scoped, tag = 'scoped memory for tpu_custom_call.1']
    #allocation7 [shape = 'u8[65536]{0}', space=vmem, size = 0x10000, scoped, tag = 'input window, operand 2, single buffered']
    #allocation8 [shape = 'u8[131072]{0}', space=vmem, size = 0x20000, scoped, tag = 'input window, operand 3, single buffered']
    #allocation9 [shape = 's32[1]{0}', space=sflag, size = 0x4, scoped, tag = 'scoped memory for tpu_custom_call.1']
    #allocation10 [shape = 'u8[131072]{0}', space=vmem, size = 0x20000, scoped, tag = 'output window, operand 0, single buffered']
    %9 = vsyncpa [#allocation3], 0
    %10 = vsyncpa [#allocation6], 0
    %11 = vsyncpa [#allocation9], 0
    %12 = vsyncpa [#allocation4], 0
    // Predicated region
    $region2: #{tpu_custom_call.1} parent=1 // pred_check
      _
    $region3: #{tpu_custom_call.1} parent=1 // pred_check_branch
      %14 = sbr.rel (0) target = $region5
    $region4: #{tpu_custom_call.1} parent=1 // pred_region
      %s16 = ssub.s32 4096, 4096
      %17 = vsyncadd [#allocation3], %s16
      %s18 = sshll.u32 [#allocation2], 4
      %s19 = int_to_ptr.vmem [resolvable:$true] %s18
      %24 = dma.hbm_to_vmem [thread:$0]  %s0, 4096, %s19, [#allocation3], 256, 256, 16
    $region5: #{tpu_custom_call.1} parent=1 // pred_fallthru
      _
    // Predicated region
    $region6: #{tpu_custom_call.1} parent=1 // pred_check
      _
    $region7: #{tpu_custom_call.1} parent=1 // pred_check_branch
      %26 = sbr.rel (0) target = $region9
    $region8: #{tpu_custom_call.1} parent=1 // pred_region
      %s28 = ssub.s32 4096, 4096
      %29 = vsyncadd [#allocation6], %s28
      %s30 = sshll.u32 [#allocation5], 4
      %s31 = int_to_ptr.vmem [resolvable:$true] %s30
      %36 = dma.hbm_to_vmem [thread:$0]  %s1, 4096, %s31, [#allocation6], 128, 128, 8
    $region9: #{tpu_custom_call.1} parent=1 // pred_fallthru
      _
    // Predicated region
    $region10: #{tpu_custom_call.1} parent=1 // pred_check
      _
    $region11: #{tpu_custom_call.1} parent=1 // pred_check_branch
      %38 = sbr.rel (0) target = $region13
    $region12: #{tpu_custom_call.1} parent=1 // pred_region
      %s40 = ssub.s32 2048, 2048
      %41 = vsyncadd [#allocation6], %s40
      %s42 = sshll.u32 [#allocation7], 4
      %s43 = int_to_ptr.vmem [resolvable:$true] %s42
      %48 = dma.hbm_to_vmem [thread:$0]  %s2, 2048, %s43, [#allocation6], 128, 128, 8
    $region13: #{tpu_custom_call.1} parent=1 // pred_fallthru
      _
    // Predicated region
    $region14: #{tpu_custom_call.1} parent=1 // pred_check
      _
    $region15: #{tpu_custom_call.1} parent=1 // pred_check_branch
      %50 = sbr.rel (0) target = $region17
    $region16: #{tpu_custom_call.1} parent=1 // pred_region
      %s52 = ssub.s32 4096, 4096
      %53 = vsyncadd [#allocation9], %s52
      %s54 = sshll.u32 [#allocation8], 4
      %s55 = int_to_ptr.vmem [resolvable:$true] %s54
      %60 = dma.hbm_to_vmem [thread:$0]  %s3, 4096, %s55, [#allocation9], 128, 128, 8
    $region17: #{tpu_custom_call.1} parent=1 // pred_fallthru
      _
    // Predicated region
    $region18: #{tpu_custom_call.1} parent=1 // pred_check
      _
    $region19: #{tpu_custom_call.1} parent=1 // pred_check_branch
      %62 = sbr.rel (0) target = $region21
    $region20: #{tpu_custom_call.1} parent=1 // pred_region
      %63 = dma.done [#allocation3], 4096
    $region21: #{tpu_custom_call.1} parent=1 // pred_fallthru
      _
    // Predicated region
    $region22: #{tpu_custom_call.1} parent=1 // pred_check
      _
    $region23: #{tpu_custom_call.1} parent=1 // pred_check_branch
      %65 = sbr.rel (0) target = $region25
    $region24: #{tpu_custom_call.1} parent=1 // pred_region
      %66 = dma.done [#allocation6], 4096
    $region25: #{tpu_custom_call.1} parent=1 // pred_fallthru
      _
    // Predicated region
    $region26: #{tpu_custom_call.1} parent=1 // pred_check
      _
    $region27: #{tpu_custom_call.1} parent=1 // pred_check_branch
      %68 = sbr.rel (0) target = $region29
    $region28: #{tpu_custom_call.1} parent=1 // pred_region
      %69 = dma.done [#allocation6], 2048
    $region29: #{tpu_custom_call.1} parent=1 // pred_fallthru
      _
    // Predicated region
    $region30: #{tpu_custom_call.1} parent=1 // pred_check
      _
    $region31: #{tpu_custom_call.1} parent=1 // pred_check_branch
      %71 = sbr.rel (0) target = $region33
    $region32: #{tpu_custom_call.1} parent=1 // pred_region
      %72 = dma.done [#allocation9], 4096
    $region33: #{tpu_custom_call.1} parent=1 // pred_fallthru
      _
    %v73 = vld [vmem:[#allocation2] sm:$0xff]
    %v74 = vld [vmem:[#allocation2 + $0x8] sm:$0xff]
    %v75 = vld [vmem:[#allocation2 + $0x10] sm:$0xff]
    %v76 = vld [vmem:[#allocation2 + $0x18] sm:$0xff]
    %v77 = vld [vmem:[#allocation2 + $0x20] sm:$0xff]
    %v78 = vld [vmem:[#allocation2 + $0x28] sm:$0xff]
    %v79 = vld [vmem:[#allocation2 + $0x30] sm:$0xff]
    %v80 = vld [vmem:[#allocation2 + $0x38] sm:$0xff]
    %v81 = vld [vmem:[#allocation2 + $0x40] sm:$0xff]
    %v82 = vld [vmem:[#allocation2 + $0x48] sm:$0xff]
    %v83 = vld [vmem:[#allocation2 + $0x50] sm:$0xff]
    %v84 = vld [vmem:[#allocation2 + $0x58] sm:$0xff]
    %v85 = vld [vmem:[#allocation2 + $0x60] sm:$0xff]
    %v86 = vld [vmem:[#allocation2 + $0x68] sm:$0xff]
    %v87 = vld [vmem:[#allocation2 + $0x70] sm:$0xff]
    %v88 = vld [vmem:[#allocation2 + $0x78] sm:$0xff]
    %v89 = vld [vmem:[#allocation2 + $0x80] sm:$0xff]
    %v90 = vld [vmem:[#allocation2 + $0x88] sm:$0xff]
    %v91 = vld [vmem:[#allocation2 + $0x90] sm:$0xff]
    %v92 = vld [vmem:[#allocation2 + $0x98] sm:$0xff]
    %v93 = vld [vmem:[#allocation2 + $0xa0] sm:$0xff]
    %v94 = vld [vmem:[#allocation2 + $0xa8] sm:$0xff]
    %v95 = vld [vmem:[#allocation2 + $0xb0] sm:$0xff]
    %v96 = vld [vmem:[#allocation2 + $0xb8] sm:$0xff]
    %v97 = vld [vmem:[#allocation2 + $0xc0] sm:$0xff]
    %v98 = vld [vmem:[#allocation2 + $0xc8] sm:$0xff]
    %v99 = vld [vmem:[#allocation2 + $0xd0] sm:$0xff]
    %v100 = vld [vmem:[#allocation2 + $0xd8] sm:$0xff]
    %v101 = vld [vmem:[#allocation2 + $0xe0] sm:$0xff]
    %v102 = vld [vmem:[#allocation2 + $0xe8] sm:$0xff]
    %v103 = vld [vmem:[#allocation2 + $0xf0] sm:$0xff]
    %v104 = vld [vmem:[#allocation2 + $0xf8] sm:$0xff]
    %v105 = vld [vmem:[#allocation5] sm:$0xff]
    %v106 = vld [vmem:[#allocation5 + $0x8] sm:$0xff]
    %v107 = vld [vmem:[#allocation5 + $0x10] sm:$0xff]
    %v108 = vld [vmem:[#allocation5 + $0x18] sm:$0xff]
    %v109 = vld [vmem:[#allocation5 + $0x20] sm:$0xff]
    %v110 = vld [vmem:[#allocation5 + $0x28] sm:$0xff]
    %v111 = vld [vmem:[#allocation5 + $0x30] sm:$0xff]
    %v112 = vld [vmem:[#allocation5 + $0x38] sm:$0xff]
    %v113 = vld [vmem:[#allocation5 + $0x40] sm:$0xff]
    %v114 = vld [vmem:[#allocation5 + $0x48] sm:$0xff]
    %v115 = vld [vmem:[#allocation5 + $0x50] sm:$0xff]
    %v116 = vld [vmem:[#allocation5 + $0x58] sm:$0xff]
    %v117 = vld [vmem:[#allocation5 + $0x60] sm:$0xff]
    %v118 = vld [vmem:[#allocation5 + $0x68] sm:$0xff]
    %v119 = vld [vmem:[#allocation5 + $0x70] sm:$0xff]
    %v120 = vld [vmem:[#allocation5 + $0x78] sm:$0xff]
    %v121 = vld [vmem:[#allocation5 + $0x80] sm:$0xff]
    %v122 = vld [vmem:[#allocation5 + $0x88] sm:$0xff]
    %v123 = vld [vmem:[#allocation5 + $0x90] sm:$0xff]
    %v124 = vld [vmem:[#allocation5 + $0x98] sm:$0xff]
    %v125 = vld [vmem:[#allocation5 + $0xa0] sm:$0xff]
    %v126 = vld [vmem:[#allocation5 + $0xa8] sm:$0xff]
    %v127 = vld [vmem:[#allocation5 + $0xb0] sm:$0xff]
    %v128 = vld [vmem:[#allocation5 + $0xb8] sm:$0xff]
    %v129 = vld [vmem:[#allocation5 + $0xc0] sm:$0xff]
    %v130 = vld [vmem:[#allocation5 + $0xc8] sm:$0xff]
    %v131 = vld [vmem:[#allocation5 + $0xd0] sm:$0xff]
    %v132 = vld [vmem:[#allocation5 + $0xd8] sm:$0xff]
    %v133 = vld [vmem:[#allocation5 + $0xe0] sm:$0xff]
    %v134 = vld [vmem:[#allocation5 + $0xe8] sm:$0xff]
    %v135 = vld [vmem:[#allocation5 + $0xf0] sm:$0xff]
    %v136 = vld [vmem:[#allocation5 + $0xf8] sm:$0xff]
    %v137 = vld [vmem:[#allocation7] sm:$0xff]
    %v138 = vld [vmem:[#allocation7 + $0x8] sm:$0xff]
    %v139 = vld [vmem:[#allocation7 + $0x10] sm:$0xff]
    %v140 = vld [vmem:[#allocation7 + $0x18] sm:$0xff]
    %v141 = vld [vmem:[#allocation7 + $0x20] sm:$0xff]
    %v142 = vld [vmem:[#allocation7 + $0x28] sm:$0xff]
    %v143 = vld [vmem:[#allocation7 + $0x30] sm:$0xff]
    %v144 = vld [vmem:[#allocation7 + $0x38] sm:$0xff]
    %v145 = vld [vmem:[#allocation7 + $0x40] sm:$0xff]
    %v146 = vld [vmem:[#allocation7 + $0x48] sm:$0xff]
    %v147 = vld [vmem:[#allocation7 + $0x50] sm:$0xff]
    %v148 = vld [vmem:[#allocation7 + $0x58] sm:$0xff]
    %v149 = vld [vmem:[#allocation7 + $0x60] sm:$0xff]
    %v150 = vld [vmem:[#allocation7 + $0x68] sm:$0xff]
    %v151 = vld [vmem:[#allocation7 + $0x70] sm:$0xff]
    %v152 = vld [vmem:[#allocation7 + $0x78] sm:$0xff]
    %v153 = vld [vmem:[#allocation8] sm:$0xff]
    %v154 = vld [vmem:[#allocation8 + $0x8] sm:$0xff]
    %v155 = vld [vmem:[#allocation8 + $0x10] sm:$0xff]
    %v156 = vld [vmem:[#allocation8 + $0x18] sm:$0xff]
    %v157 = vld [vmem:[#allocation8 + $0x20] sm:$0xff]
    %v158 = vld [vmem:[#allocation8 + $0x28] sm:$0xff]
    %v159 = vld [vmem:[#allocation8 + $0x30] sm:$0xff]
    %v160 = vld [vmem:[#allocation8 + $0x38] sm:$0xff]
    %v161 = vld [vmem:[#allocation8 + $0x40] sm:$0xff]
    %v162 = vld [vmem:[#allocation8 + $0x48] sm:$0xff]
    %v163 = vld [vmem:[#allocation8 + $0x50] sm:$0xff]
    %v164 = vld [vmem:[#allocation8 + $0x58] sm:$0xff]
    %v165 = vld [vmem:[#allocation8 + $0x60] sm:$0xff]
    %v166 = vld [vmem:[#allocation8 + $0x68] sm:$0xff]
    %v167 = vld [vmem:[#allocation8 + $0x70] sm:$0xff]
    %v168 = vld [vmem:[#allocation8 + $0x78] sm:$0xff]
    %v169 = vld [vmem:[#allocation8 + $0x80] sm:$0xff]
    %v170 = vld [vmem:[#allocation8 + $0x88] sm:$0xff]
    %v171 = vld [vmem:[#allocation8 + $0x90] sm:$0xff]
    %v172 = vld [vmem:[#allocation8 + $0x98] sm:$0xff]
    %v173 = vld [vmem:[#allocation8 + $0xa0] sm:$0xff]
    %v174 = vld [vmem:[#allocation8 + $0xa8] sm:$0xff]
    %v175 = vld [vmem:[#allocation8 + $0xb0] sm:$0xff]
    %v176 = vld [vmem:[#allocation8 + $0xb8] sm:$0xff]
    %v177 = vld [vmem:[#allocation8 + $0xc0] sm:$0xff]
    %v178 = vld [vmem:[#allocation8 + $0xc8] sm:$0xff]
    %v179 = vld [vmem:[#allocation8 + $0xd0] sm:$0xff]
    %v180 = vld [vmem:[#allocation8 + $0xd8] sm:$0xff]
    %v181 = vld [vmem:[#allocation8 + $0xe0] sm:$0xff]
    %v182 = vld [vmem:[#allocation8 + $0xe8] sm:$0xff]
    %v183 = vld [vmem:[#allocation8 + $0xf0] sm:$0xff]
    %v184 = vld [vmem:[#allocation8 + $0xf8] sm:$0xff]
    %185 = vmatprep.subr.mxu0 0.0
    %186 = vmatpush1.msra.mxu0 %v137
    %187 = vmatprep.subr.mxu0 0.0
    %188 = vmatpush1.msra.mxu0 %v138
    %189 = vmatprep.subr.mxu0 0.0
    %190 = vmatpush1.msra.mxu0 %v139
    %191 = vmatprep.subr.mxu0 0.0
    %192 = vmatpush1.msra.mxu0 %v140
    %193 = vmatprep.subr.mxu0 0.0
    %194 = vmatpush1.msra.mxu0 %v141
    %195 = vmatprep.subr.mxu0 0.0
    %196 = vmatpush1.msra.mxu0 %v142
    %197 = vmatprep.subr.mxu0 0.0
    %198 = vmatpush1.msra.mxu0 %v143
    %199 = vmatprep.subr.mxu0 0.0
    %200 = vmatpush1.msra.mxu0 %v144
    %201 = vmatprep.subr.mxu0 0.0
    %202 = vmatpush1.msra.mxu0 %v145
    %203 = vmatprep.subr.mxu0 0.0
    %204 = vmatpush1.msra.mxu0 %v146
    %205 = vmatprep.subr.mxu0 0.0
    %206 = vmatpush1.msra.mxu0 %v147
    %207 = vmatprep.subr.mxu0 0.0
    %208 = vmatpush1.msra.mxu0 %v148
    %209 = vmatprep.subr.mxu0 0.0
    %210 = vmatpush1.msra.mxu0 %v149
    %211 = vmatprep.subr.mxu0 0.0
    %212 = vmatpush1.msra.mxu0 %v150
    %213 = vmatprep.subr.mxu0 0.0
    %214 = vmatpush1.msra.mxu0 %v151
    %215 = vmatprep.subr.mxu0 0.0
    %216 = vmatpush1.msra.mxu0 %v152
    %217 = vmatprep.subr.mxu0 0.0
    %218 = vmatpush1.msra.mxu0 0.0
    %219 = vmatprep.subr.mxu0 0.0
    %220 = vmatpush1.msra.mxu0 0.0
    %221 = vmatprep.subr.mxu0 0.0
    %222 = vmatpush1.msra.mxu0 0.0
    %223 = vmatprep.subr.mxu0 0.0
    %224 = vmatpush1.msra.mxu0 0.0
    %225 = vmatprep.subr.mxu0 0.0
    %226 = vmatpush1.msra.mxu0 0.0
    %227 = vmatprep.subr.mxu0 0.0
    %228 = vmatpush1.msra.mxu0 0.0
    %229 = vmatprep.subr.mxu0 0.0
    %230 = vmatpush1.msra.mxu0 0.0
    %231 = vmatprep.subr.mxu0 0.0
    %232 = vmatpush1.msra.mxu0 0.0
    %233 = vmatprep.subr.mxu0 0.0
    %234 = vmatpush1.msra.mxu0 0.0
    %235 = vmatprep.subr.mxu0 0.0
    %236 = vmatpush1.msra.mxu0 0.0
    %237 = vmatprep.subr.mxu0 0.0
    %238 = vmatpush1.msra.mxu0 0.0
    %239 = vmatprep.subr.mxu0 0.0
    %240 = vmatpush1.msra.mxu0 0.0
    %241 = vmatprep.subr.mxu0 0.0
    %242 = vmatpush1.msra.mxu0 0.0
    %243 = vmatprep.subr.mxu0 0.0
    %244 = vmatpush1.msra.mxu0 0.0
    %245 = vmatprep.subr.mxu0 0.0
    %246 = vmatpush1.msra.mxu0 0.0
    %247 = vmatprep.subr.mxu0 0.0
    %248 = vmatpush1.msra.mxu0 0.0
    %249 = vmatprep.mubr.f32.mxu0 0.0
    %250 = vmatmul.mubr.f32.gmra.mrb[0].mxu0 %v105
    %v251 = vpop.f32.mrb[0].mxu0
    %v252 = vadd.f32 0.0, %v251
    %v253 = vpop.f32.mrb[0].mxu0
    %254 = vmatprep.mubr.f32.mxu0 0.0
    %255 = vmatmul.mubr.f32.gmra.mrb[0].mxu0 %v106
    %v256 = vpop.f32.mrb[0].mxu0
    %v257 = vadd.f32 0.0, %v256
    %v258 = vpop.f32.mrb[0].mxu0
    %259 = vmatprep.mubr.f32.mxu0 0.0
    %260 = vmatmul.mubr.f32.gmra.mrb[0].mxu0 %v107
    %v261 = vpop.f32.mrb[0].mxu0
    %v262 = vadd.f32 0.0, %v261
    %v263 = vpop.f32.mrb[0].mxu0
    %264 = vmatprep.mubr.f32.mxu0 0.0
    %265 = vmatmul.mubr.f32.gmra.mrb[0].mxu0 %v108
    %v266 = vpop.f32.mrb[0].mxu0
    %v267 = vadd.f32 0.0, %v266
    %v268 = vpop.f32.mrb[0].mxu0
    %269 = vmatprep.mubr.f32.mxu0 0.0
    %270 = vmatmul.mubr.f32.gmra.mrb[0].mxu0 %v109
    %v271 = vpop.f32.mrb[0].mxu0
    %v272 = vadd.f32 0.0, %v271
    %v273 = vpop.f32.mrb[0].mxu0
    %274 = vmatprep.mubr.f32.mxu0 0.0
    %275 = vmatmul.mubr.f32.gmra.mrb[0].mxu0 %v110
    %v276 = vpop.f32.mrb[0].mxu0
    %v277 = vadd.f32 0.0, %v276
    %v278 = vpop.f32.mrb[0].mxu0
    %279 = vmatprep.mubr.f32.mxu0 0.0
    %280 = vmatmul.mubr.f32.gmra.mrb[0].mxu0 %v111
    %v281 = vpop.f32.mrb[0].mxu0
    %v282 = vadd.f32 0.0, %v281
    %v283 = vpop.f32.mrb[0].mxu0
    %284 = vmatprep.mubr.f32.mxu0 0.0
    %285 = vmatmul.mubr.f32.gmra.mrb[0].mxu0 %v112
    %v286 = vpop.f32.mrb[0].mxu0
    %v287 = vadd.f32 0.0, %v286
    %v288 = vpop.f32.mrb[0].mxu0
    %289 = vmatprep.mubr.f32.mxu0 0.0
    %290 = vmatmul.mubr.f32.gmra.mrb[0].mxu0 %v113
    %v291 = vpop.f32.mrb[0].mxu0
    %v292 = vadd.f32 0.0, %v291
    %v293 = vpop.f32.mrb[0].mxu0
    %294 = vmatprep.mubr.f32.mxu0 0.0
    %295 = vmatmul.mubr.f32.gmra.mrb[0].mxu0 %v114
    %v296 = vpop.f32.mrb[0].mxu0
    %v297 = vadd.f32 0.0, %v296
    %v298 = vpop.f32.mrb[0].mxu0
    %299 = vmatprep.mubr.f32.mxu0 0.0
    %300 = vmatmul.mubr.f32.gmra.mrb[0].mxu0 %v115
    %v301 = vpop.f32.mrb[0].mxu0
    %v302 = vadd.f32 0.0, %v301
    %v303 = vpop.f32.mrb[0].mxu0
    %304 = vmatprep.mubr.f32.mxu0 0.0
    %305 = vmatmul.mubr.f32.gmra.mrb[0].mxu0 %v116
    %v306 = vpop.f32.mrb[0].mxu0
    %v307 = vadd.f32 0.0, %v306
    %v308 = vpop.f32.mrb[0].mxu0
    %309 = vmatprep.mubr.f32.mxu0 0.0
    %310 = vmatmul.mubr.f32.gmra.mrb[0].mxu0 %v117
    %v311 = vpop.f32.mrb[0].mxu0
    %v312 = vadd.f32 0.0, %v311
    %v313 = vpop.f32.mrb[0].mxu0
    %314 = vmatprep.mubr.f32.mxu0 0.0
    %315 = vmatmul.mubr.f32.gmra.mrb[0].mxu0 %v118
    %v316 = vpop.f32.mrb[0].mxu0
    %v317 = vadd.f32 0.0, %v316
    %v318 = vpop.f32.mrb[0].mxu0
    %319 = vmatprep.mubr.f32.mxu0 0.0
    %320 = vmatmul.mubr.f32.gmra.mrb[0].mxu0 %v119
    %v321 = vpop.f32.mrb[0].mxu0
    %v322 = vadd.f32 0.0, %v321
    %v323 = vpop.f32.mrb[0].mxu0
    %324 = vmatprep.mubr.f32.mxu0 0.0
    %325 = vmatmul.mubr.f32.gmra.mrb[0].mxu0 %v120
    %v326 = vpop.f32.mrb[0].mxu0
    %v327 = vadd.f32 0.0, %v326
    %v328 = vpop.f32.mrb[0].mxu0
    %329 = vmatprep.mubr.f32.mxu0 0.0
    %330 = vmatmul.mubr.f32.gmra.mrb[0].mxu0 %v121
    %v331 = vpop.f32.mrb[0].mxu0
    %v332 = vadd.f32 0.0, %v331
    %v333 = vpop.f32.mrb[0].mxu0
    %334 = vmatprep.mubr.f32.mxu0 0.0
    %335 = vmatmul.mubr.f32.gmra.mrb[0].mxu0 %v122
    %v336 = vpop.f32.mrb[0].mxu0
    %v337 = vadd.f32 0.0, %v336
    %v338 = vpop.f32.mrb[0].mxu0
    %339 = vmatprep.mubr.f32.mxu0 0.0
    %340 = vmatmul.mubr.f32.gmra.mrb[0].mxu0 %v123
    %v341 = vpop.f32.mrb[0].mxu0
    %v342 = vadd.f32 0.0, %v341
    %v343 = vpop.f32.mrb[0].mxu0
    %344 = vmatprep.mubr.f32.mxu0 0.0
    %345 = vmatmul.mubr.f32.gmra.mrb[0].mxu0 %v124
    %v346 = vpop.f32.mrb[0].mxu0
    %v347 = vadd.f32 0.0, %v346
    %v348 = vpop.f32.mrb[0].mxu0
    %349 = vmatprep.mubr.f32.mxu0 0.0
    %350 = vmatmul.mubr.f32.gmra.mrb[0].mxu0 %v125
    %v351 = vpop.f32.mrb[0].mxu0
    %v352 = vadd.f32 0.0, %v351
    %v353 = vpop.f32.mrb[0].mxu0
    %354 = vmatprep.mubr.f32.mxu0 0.0
    %355 = vmatmul.mubr.f32.gmra.mrb[0].mxu0 %v126
    %v356 = vpop.f32.mrb[0].mxu0
    %v357 = vadd.f32 0.0, %v356
    %v358 = vpop.f32.mrb[0].mxu0
    %359 = vmatprep.mubr.f32.mxu0 0.0
    %360 = vmatmul.mubr.f32.gmra.mrb[0].mxu0 %v127
    %v361 = vpop.f32.mrb[0].mxu0
    %v362 = vadd.f32 0.0, %v361
    %v363 = vpop.f32.mrb[0].mxu0
    %364 = vmatprep.mubr.f32.mxu0 0.0
    %365 = vmatmul.mubr.f32.gmra.mrb[0].mxu0 %v128
    %v366 = vpop.f32.mrb[0].mxu0
    %v367 = vadd.f32 0.0, %v366
    %v368 = vpop.f32.mrb[0].mxu0
    %369 = vmatprep.mubr.f32.mxu0 0.0
    %370 = vmatmul.mubr.f32.gmra.mrb[0].mxu0 %v129
    %v371 = vpop.f32.mrb[0].mxu0
    %v372 = vadd.f32 0.0, %v371
    %v373 = vpop.f32.mrb[0].mxu0
    %374 = vmatprep.mubr.f32.mxu0 0.0
    %375 = vmatmul.mubr.f32.gmra.mrb[0].mxu0 %v130
    %v376 = vpop.f32.mrb[0].mxu0
    %v377 = vadd.f32 0.0, %v376
    %v378 = vpop.f32.mrb[0].mxu0
    %379 = vmatprep.mubr.f32.mxu0 0.0
    %380 = vmatmul.mubr.f32.gmra.mrb[0].mxu0 %v131
    %v381 = vpop.f32.mrb[0].mxu0
    %v382 = vadd.f32 0.0, %v381
    %v383 = vpop.f32.mrb[0].mxu0
    %384 = vmatprep.mubr.f32.mxu0 0.0
    %385 = vmatmul.mubr.f32.gmra.mrb[0].mxu0 %v132
    %v386 = vpop.f32.mrb[0].mxu0
    %v387 = vadd.f32 0.0, %v386
    %v388 = vpop.f32.mrb[0].mxu0
    %389 = vmatprep.mubr.f32.mxu0 0.0
    %390 = vmatmul.mubr.f32.gmra.mrb[0].mxu0 %v133
    %v391 = vpop.f32.mrb[0].mxu0
    %v392 = vadd.f32 0.0, %v391
    %v393 = vpop.f32.mrb[0].mxu0
    %394 = vmatprep.mubr.f32.mxu0 0.0
    %395 = vmatmul.mubr.f32.gmra.mrb[0].mxu0 %v134
    %v396 = vpop.f32.mrb[0].mxu0
    %v397 = vadd.f32 0.0, %v396
    %v398 = vpop.f32.mrb[0].mxu0
    %399 = vmatprep.mubr.f32.mxu0 0.0
    %400 = vmatmul.mubr.f32.gmra.mrb[0].mxu0 %v135
    %v401 = vpop.f32.mrb[0].mxu0
    %v402 = vadd.f32 0.0, %v401
    %v403 = vpop.f32.mrb[0].mxu0
    %404 = vmatprep.mubr.f32.mxu0 0.0
    %405 = vmatmul.mubr.f32.gmra.mrb[0].mxu0 %v136
    %v406 = vpop.f32.mrb[0].mxu0
    %v407 = vadd.f32 0.0, %v406
    %v408 = vpop.f32.mrb[0].mxu0
    %409 = vdwg.mxu0
    %v410 = vmul.f32 %v153, 0.33333334
    %v411 = vmul.f32 %v154, 0.33333334
    %v412 = vmul.f32 %v155, 0.33333334
    %v413 = vmul.f32 %v156, 0.33333334
    %v414 = vmul.f32 %v157, 0.33333334
    %v415 = vmul.f32 %v158, 0.33333334
    %v416 = vmul.f32 %v159, 0.33333334
    %v417 = vmul.f32 %v160, 0.33333334
    %v418 = vmul.f32 %v161, 0.33333334
    %v419 = vmul.f32 %v162, 0.33333334
    %v420 = vmul.f32 %v163, 0.33333334
    %v421 = vmul.f32 %v164, 0.33333334
    %v422 = vmul.f32 %v165, 0.33333334
    %v423 = vmul.f32 %v166, 0.33333334
    %v424 = vmul.f32 %v167, 0.33333334
    %v425 = vmul.f32 %v168, 0.33333334
    %v426 = vmul.f32 %v169, 0.33333334
    %v427 = vmul.f32 %v170, 0.33333334
    %v428 = vmul.f32 %v171, 0.33333334
    %v429 = vmul.f32 %v172, 0.33333334
    %v430 = vmul.f32 %v173, 0.33333334
    %v431 = vmul.f32 %v174, 0.33333334
    %v432 = vmul.f32 %v175, 0.33333334
    %v433 = vmul.f32 %v176, 0.33333334
    %v434 = vmul.f32 %v177, 0.33333334
    %v435 = vmul.f32 %v178, 0.33333334
    %v436 = vmul.f32 %v179, 0.33333334
    %v437 = vmul.f32 %v180, 0.33333334
    %v438 = vmul.f32 %v181, 0.33333334
    %v439 = vmul.f32 %v182, 0.33333334
    %v440 = vmul.f32 %v183, 0.33333334
    %v441 = vmul.f32 %v184, 0.33333334
    %v442 = vmul.f32 %v252, 0.25
    %v443 = vmul.f32 %v257, 0.25
    %v444 = vmul.f32 %v262, 0.25
    %v445 = vmul.f32 %v267, 0.25
    %v446 = vmul.f32 %v272, 0.25
    %v447 = vmul.f32 %v277, 0.25
    %v448 = vmul.f32 %v282, 0.25
    %v449 = vmul.f32 %v287, 0.25
    %v450 = vmul.f32 %v292, 0.25
    %v451 = vmul.f32 %v297, 0.25
    %v452 = vmul.f32 %v302, 0.25
    %v453 = vmul.f32 %v307, 0.25
    %v454 = vmul.f32 %v312, 0.25
    %v455 = vmul.f32 %v317, 0.25
    %v456 = vmul.f32 %v322, 0.25
    %v457 = vmul.f32 %v327, 0.25
    %v458 = vmul.f32 %v332, 0.25
    %v459 = vmul.f32 %v337, 0.25
    %v460 = vmul.f32 %v342, 0.25
    %v461 = vmul.f32 %v347, 0.25
    %v462 = vmul.f32 %v352, 0.25
    %v463 = vmul.f32 %v357, 0.25
    %v464 = vmul.f32 %v362, 0.25
    %v465 = vmul.f32 %v367, 0.25
    %v466 = vmul.f32 %v372, 0.25
    %v467 = vmul.f32 %v377, 0.25
    %v468 = vmul.f32 %v382, 0.25
    %v469 = vmul.f32 %v387, 0.25
    %v470 = vmul.f32 %v392, 0.25
    %v471 = vmul.f32 %v397, 0.25
    %v472 = vmul.f32 %v402, 0.25
    %v473 = vmul.f32 %v407, 0.25
    %v474 = vadd.f32 %v410, %v442
    %v475 = vadd.f32 %v411, %v443
    %v476 = vadd.f32 %v412, %v444
    %v477 = vadd.f32 %v413, %v445
    %v478 = vadd.f32 %v414, %v446
    %v479 = vadd.f32 %v415, %v447
    %v480 = vadd.f32 %v416, %v448
    %v481 = vadd.f32 %v417, %v449
    %v482 = vadd.f32 %v418, %v450
    %v483 = vadd.f32 %v419, %v451
    %v484 = vadd.f32 %v420, %v452
    %v485 = vadd.f32 %v421, %v453
    %v486 = vadd.f32 %v422, %v454
    %v487 = vadd.f32 %v423, %v455
    %v488 = vadd.f32 %v424, %v456
    %v489 = vadd.f32 %v425, %v457
    %v490 = vadd.f32 %v426, %v458
    %v491 = vadd.f32 %v427, %v459
    %v492 = vadd.f32 %v428, %v460
    %v493 = vadd.f32 %v429, %v461
    %v494 = vadd.f32 %v430, %v462
    %v495 = vadd.f32 %v431, %v463
    %v496 = vadd.f32 %v432, %v464
    %v497 = vadd.f32 %v433, %v465
    %v498 = vadd.f32 %v434, %v466
    %v499 = vadd.f32 %v435, %v467
    %v500 = vadd.f32 %v436, %v468
    %v501 = vadd.f32 %v437, %v469
    %v502 = vadd.f32 %v438, %v470
    %v503 = vadd.f32 %v439, %v471
    %v504 = vadd.f32 %v440, %v472
    %v505 = vadd.f32 %v441, %v473
    %v506 = vmul.f32 %v137, 0.5
    %v507 = vmul.f32 %v138, 0.5
    %v508 = vmul.f32 %v139, 0.5
    %v509 = vmul.f32 %v140, 0.5
    %v510 = vmul.f32 %v141, 0.5
    %v511 = vmul.f32 %v142, 0.5
    %v512 = vmul.f32 %v143, 0.5
    %v513 = vmul.f32 %v144, 0.5
    %v514 = vmul.f32 %v145, 0.5
    %v515 = vmul.f32 %v146, 0.5
    %v516 = vmul.f32 %v147, 0.5
    %v517 = vmul.f32 %v148, 0.5
    %v518 = vmul.f32 %v149, 0.5
    %v519 = vmul.f32 %v150, 0.5
    %v520 = vmul.f32 %v151, 0.5
    %v521 = vmul.f32 %v152, 0.5
    %522 = vmatprep.subr.mxu0 0.0
    %523 = vmatpush1.msra.mxu0 %v474
    %524 = vmatprep.subr.mxu0 0.0
    %525 = vmatpush1.msra.mxu0 %v475
    %526 = vmatprep.subr.mxu0 0.0
    %527 = vmatpush1.msra.mxu0 %v476
    %528 = vmatprep.subr.mxu0 0.0
    %529 = vmatpush1.msra.mxu0 %v477
    %530 = vmatprep.subr.mxu0 0.0
    %531 = vmatpush1.msra.mxu0 %v478
    %532 = vmatprep.subr.mxu0 0.0
    %533 = vmatpush1.msra.mxu0 %v479
    %534 = vmatprep.subr.mxu0 0.0
    %535 = vmatpush1.msra.mxu0 %v480
    %536 = vmatprep.subr.mxu0 0.0
    %537 = vmatpush1.msra.mxu0 %v481
    %538 = vmatprep.subr.mxu0 0.0
    %539 = vmatpush1.msra.mxu0 %v482
    %540 = vmatprep.subr.mxu0 0.0
    %541 = vmatpush1.msra.mxu0 %v483
    %542 = vmatprep.subr.mxu0 0.0
    %543 = vmatpush1.msra.mxu0 %v484
    %544 = vmatprep.subr.mxu0 0.0
    %545 = vmatpush1.msra.mxu0 %v485
    %546 = vmatprep.subr.mxu0 0.0
    %547 = vmatpush1.msra.mxu0 %v486
    %548 = vmatprep.subr.mxu0 0.0
    %549 = vmatpush1.msra.mxu0 %v487
    %550 = vmatprep.subr.mxu0 0.0
    %551 = vmatpush1.msra.mxu0 %v488
    %552 = vmatprep.subr.mxu0 0.0
    %553 = vmatpush1.msra.mxu0 %v489
    %554 = vmatprep.subr.mxu0 0.0
    %555 = vmatpush1.msra.mxu0 %v490
    %556 = vmatprep.subr.mxu0 0.0
    %557 = vmatpush1.msra.mxu0 %v491
    %558 = vmatprep.subr.mxu0 0.0
    %559 = vmatpush1.msra.mxu0 %v492
    %560 = vmatprep.subr.mxu0 0.0
    %561 = vmatpush1.msra.mxu0 %v493
    %562 = vmatprep.subr.mxu0 0.0
    %563 = vmatpush1.msra.mxu0 %v494
    %564 = vmatprep.subr.mxu0 0.0
    %565 = vmatpush1.msra.mxu0 %v495
    %566 = vmatprep.subr.mxu0 0.0
    %567 = vmatpush1.msra.mxu0 %v496
    %568 = vmatprep.subr.mxu0 0.0
    %569 = vmatpush1.msra.mxu0 %v497
    %570 = vmatprep.subr.mxu0 0.0
    %571 = vmatpush1.msra.mxu0 %v498
    %572 = vmatprep.subr.mxu0 0.0
    %573 = vmatpush1.msra.mxu0 %v499
    %574 = vmatprep.subr.mxu0 0.0
    %575 = vmatpush1.msra.mxu0 %v500
    %576 = vmatprep.subr.mxu0 0.0
    %577 = vmatpush1.msra.mxu0 %v501
    %578 = vmatprep.subr.mxu0 0.0
    %579 = vmatpush1.msra.mxu0 %v502
    %580 = vmatprep.subr.mxu0 0.0
    %581 = vmatpush1.msra.mxu0 %v503
    %582 = vmatprep.subr.mxu0 0.0
    %583 = vmatpush1.msra.mxu0 %v504
    %584 = vmatprep.subr.mxu0 0.0
    %585 = vmatpush1.msra.mxu0 %v505
    %586 = vmatprep.mubr.f32.mxu0 %v74
    %587 = vmatmul.mubr.f32.gmra.mrb[0].mxu0 %v73
    %v588 = vpop.f32.mrb[0].mxu0
    %v589 = vadd.f32 0.0, %v588
    %v590 = vpop.f32.mrb[0].mxu0
    %591 = vmatprep.mubr.f32.mxu0 %v76
    %592 = vmatmul.mubr.f32.gmra.mrb[0].mxu0 %v75
    %v593 = vpop.f32.mrb[0].mxu0
    %v594 = vadd.f32 0.0, %v593
    %v595 = vpop.f32.mrb[0].mxu0
    %596 = vmatprep.mubr.f32.mxu0 %v78
    %597 = vmatmul.mubr.f32.gmra.mrb[0].mxu0 %v77
    %v598 = vpop.f32.mrb[0].mxu0
    %v599 = vadd.f32 0.0, %v598
    %v600 = vpop.f32.mrb[0].mxu0
    %601 = vmatprep.mubr.f32.mxu0 %v80
    %602 = vmatmul.mubr.f32.gmra.mrb[0].mxu0 %v79
    %v603 = vpop.f32.mrb[0].mxu0
    %v604 = vadd.f32 0.0, %v603
    %v605 = vpop.f32.mrb[0].mxu0
    %606 = vmatprep.mubr.f32.mxu0 %v82
    %607 = vmatmul.mubr.f32.gmra.mrb[0].mxu0 %v81
    %v608 = vpop.f32.mrb[0].mxu0
    %v609 = vadd.f32 0.0, %v608
    %v610 = vpop.f32.mrb[0].mxu0
    %611 = vmatprep.mubr.f32.mxu0 %v84
    %612 = vmatmul.mubr.f32.gmra.mrb[0].mxu0 %v83
    %v613 = vpop.f32.mrb[0].mxu0
    %v614 = vadd.f32 0.0, %v613
    %v615 = vpop.f32.mrb[0].mxu0
    %616 = vmatprep.mubr.f32.mxu0 %v86
    %617 = vmatmul.mubr.f32.gmra.mrb[0].mxu0 %v85
    %v618 = vpop.f32.mrb[0].mxu0
    %v619 = vadd.f32 0.0, %v618
    %v620 = vpop.f32.mrb[0].mxu0
    %621 = vmatprep.mubr.f32.mxu0 %v88
    %622 = vmatmul.mubr.f32.gmra.mrb[0].mxu0 %v87
    %v623 = vpop.f32.mrb[0].mxu0
    %v624 = vadd.f32 0.0, %v623
    %v625 = vpop.f32.mrb[0].mxu0
    %626 = vmatprep.mubr.f32.mxu0 %v90
    %627 = vmatmul.mubr.f32.gmra.mrb[0].mxu0 %v89
    %v628 = vpop.f32.mrb[0].mxu0
    %v629 = vadd.f32 0.0, %v628
    %v630 = vpop.f32.mrb[0].mxu0
    %631 = vmatprep.mubr.f32.mxu0 %v92
    %632 = vmatmul.mubr.f32.gmra.mrb[0].mxu0 %v91
    %v633 = vpop.f32.mrb[0].mxu0
    %v634 = vadd.f32 0.0, %v633
    %v635 = vpop.f32.mrb[0].mxu0
    %636 = vmatprep.mubr.f32.mxu0 %v94
    %637 = vmatmul.mubr.f32.gmra.mrb[0].mxu0 %v93
    %v638 = vpop.f32.mrb[0].mxu0
    %v639 = vadd.f32 0.0, %v638
    %v640 = vpop.f32.mrb[0].mxu0
    %641 = vmatprep.mubr.f32.mxu0 %v96
    %642 = vmatmul.mubr.f32.gmra.mrb[0].mxu0 %v95
    %v643 = vpop.f32.mrb[0].mxu0
    %v644 = vadd.f32 0.0, %v643
    %v645 = vpop.f32.mrb[0].mxu0
    %646 = vmatprep.mubr.f32.mxu0 %v98
    %647 = vmatmul.mubr.f32.gmra.mrb[0].mxu0 %v97
    %v648 = vpop.f32.mrb[0].mxu0
    %v649 = vadd.f32 0.0, %v648
    %v650 = vpop.f32.mrb[0].mxu0
    %651 = vmatprep.mubr.f32.mxu0 %v100
    %652 = vmatmul.mubr.f32.gmra.mrb[0].mxu0 %v99
    %v653 = vpop.f32.mrb[0].mxu0
    %v654 = vadd.f32 0.0, %v653
    %v655 = vpop.f32.mrb[0].mxu0
    %656 = vmatprep.mubr.f32.mxu0 %v102
    %657 = vmatmul.mubr.f32.gmra.mrb[0].mxu0 %v101
    %v658 = vpop.f32.mrb[0].mxu0
    %v659 = vadd.f32 0.0, %v658
    %v660 = vpop.f32.mrb[0].mxu0
    %661 = vmatprep.mubr.f32.mxu0 %v104
    %662 = vmatmul.mubr.f32.gmra.mrb[0].mxu0 %v103
    %v663 = vpop.f32.mrb[0].mxu0
    %v664 = vadd.f32 0.0, %v663
    %v665 = vpop.f32.mrb[0].mxu0
    %666 = vdwg.mxu0
    %v667 = vadd.f32 %v506, %v589
    %v668 = vadd.f32 %v507, %v594
    %v669 = vadd.f32 %v508, %v599
    %v670 = vadd.f32 %v509, %v604
    %v671 = vadd.f32 %v510, %v609
    %v672 = vadd.f32 %v511, %v614
    %v673 = vadd.f32 %v512, %v619
    %v674 = vadd.f32 %v513, %v624
    %v675 = vadd.f32 %v514, %v629
    %v676 = vadd.f32 %v515, %v634
    %v677 = vadd.f32 %v516, %v639
    %v678 = vadd.f32 %v517, %v644
    %v679 = vadd.f32 %v518, %v649
    %v680 = vadd.f32 %v519, %v654
    %v681 = vadd.f32 %v520, %v659
    %v682 = vadd.f32 %v521, %v664
    %683 = vmatprep.subr.mxu0 0.0
    %684 = vmatpush1.msra.mxu0 %v667
    %685 = vmatprep.subr.mxu0 0.0
    %686 = vmatpush1.msra.mxu0 %v668
    %687 = vmatprep.subr.mxu0 0.0
    %688 = vmatpush1.msra.mxu0 %v669
    %689 = vmatprep.subr.mxu0 0.0
    %690 = vmatpush1.msra.mxu0 %v670
    %691 = vmatprep.subr.mxu0 0.0
    %692 = vmatpush1.msra.mxu0 %v671
    %693 = vmatprep.subr.mxu0 0.0
    %694 = vmatpush1.msra.mxu0 %v672
    %695 = vmatprep.subr.mxu0 0.0
    %696 = vmatpush1.msra.mxu0 %v673
    %697 = vmatprep.subr.mxu0 0.0
    %698 = vmatpush1.msra.mxu0 %v674
    %699 = vmatprep.subr.mxu0 0.0
    %700 = vmatpush1.msra.mxu0 %v675
    %701 = vmatprep.subr.mxu0 0.0
    %702 = vmatpush1.msra.mxu0 %v676
    %703 = vmatprep.subr.mxu0 0.0
    %704 = vmatpush1.msra.mxu0 %v677
    %705 = vmatprep.subr.mxu0 0.0
    %706 = vmatpush1.msra.mxu0 %v678
    %707 = vmatprep.subr.mxu0 0.0
    %708 = vmatpush1.msra.mxu0 %v679
    %709 = vmatprep.subr.mxu0 0.0
    %710 = vmatpush1.msra.mxu0 %v680
    %711 = vmatprep.subr.mxu0 0.0
    %712 = vmatpush1.msra.mxu0 %v681
    %713 = vmatprep.subr.mxu0 0.0
    %714 = vmatpush1.msra.mxu0 %v682
    %715 = vmatprep.subr.mxu0 0.0
    %716 = vmatpush1.msra.mxu0 0.0
    %717 = vmatprep.subr.mxu0 0.0
    %718 = vmatpush1.msra.mxu0 0.0
    %719 = vmatprep.subr.mxu0 0.0
    %720 = vmatpush1.msra.mxu0 0.0
    %721 = vmatprep.subr.mxu0 0.0
    %722 = vmatpush1.msra.mxu0 0.0
    %723 = vmatprep.subr.mxu0 0.0
    %724 = vmatpush1.msra.mxu0 0.0
    %725 = vmatprep.subr.mxu0 0.0
    %726 = vmatpush1.msra.mxu0 0.0
    %727 = vmatprep.subr.mxu0 0.0
    %728 = vmatpush1.msra.mxu0 0.0
    %729 = vmatprep.subr.mxu0 0.0
    %730 = vmatpush1.msra.mxu0 0.0
    %731 = vmatprep.subr.mxu0 0.0
    %732 = vmatpush1.msra.mxu0 0.0
    %733 = vmatprep.subr.mxu0 0.0
    %734 = vmatpush1.msra.mxu0 0.0
    %735 = vmatprep.subr.mxu0 0.0
    %736 = vmatpush1.msra.mxu0 0.0
    %737 = vmatprep.subr.mxu0 0.0
    %738 = vmatpush1.msra.mxu0 0.0
    %739 = vmatprep.subr.mxu0 0.0
    %740 = vmatpush1.msra.mxu0 0.0
    %741 = vmatprep.subr.mxu0 0.0
    %742 = vmatpush1.msra.mxu0 0.0
    %743 = vmatprep.subr.mxu0 0.0
    %744 = vmatpush1.msra.mxu0 0.0
    %745 = vmatprep.subr.mxu0 0.0
    %746 = vmatpush1.msra.mxu0 0.0
    %747 = vmatprep.mubr.f32.mxu0 0.0
    %748 = vmatmul.mubr.f32.gmra.mrb[0].mxu0 %v105
    %v749 = vpop.f32.mrb[0].mxu0
    %v750 = vadd.f32 0.0, %v749
    %v751 = vpop.f32.mrb[0].mxu0
    %752 = vmatprep.mubr.f32.mxu0 0.0
    %753 = vmatmul.mubr.f32.gmra.mrb[0].mxu0 %v106
    %v754 = vpop.f32.mrb[0].mxu0
    %v755 = vadd.f32 0.0, %v754
    %v756 = vpop.f32.mrb[0].mxu0
    %757 = vmatprep.mubr.f32.mxu0 0.0
    %758 = vmatmul.mubr.f32.gmra.mrb[0].mxu0 %v107
    %v759 = vpop.f32.mrb[0].mxu0
    %v760 = vadd.f32 0.0, %v759
    %v761 = vpop.f32.mrb[0].mxu0
    %762 = vmatprep.mubr.f32.mxu0 0.0
    %763 = vmatmul.mubr.f32.gmra.mrb[0].mxu0 %v108
    %v764 = vpop.f32.mrb[0].mxu0
    %v765 = vadd.f32 0.0, %v764
    %v766 = vpop.f32.mrb[0].mxu0
    %767 = vmatprep.mubr.f32.mxu0 0.0
    %768 = vmatmul.mubr.f32.gmra.mrb[0].mxu0 %v109
    %v769 = vpop.f32.mrb[0].mxu0
    %v770 = vadd.f32 0.0, %v769
    %v771 = vpop.f32.mrb[0].mxu0
    %772 = vmatprep.mubr.f32.mxu0 0.0
    %773 = vmatmul.mubr.f32.gmra.mrb[0].mxu0 %v110
    %v774 = vpop.f32.mrb[0].mxu0
    %v775 = vadd.f32 0.0, %v774
    %v776 = vpop.f32.mrb[0].mxu0
    %777 = vmatprep.mubr.f32.mxu0 0.0
    %778 = vmatmul.mubr.f32.gmra.mrb[0].mxu0 %v111
    %v779 = vpop.f32.mrb[0].mxu0
    %v780 = vadd.f32 0.0, %v779
    %v781 = vpop.f32.mrb[0].mxu0
    %782 = vmatprep.mubr.f32.mxu0 0.0
    %783 = vmatmul.mubr.f32.gmra.mrb[0].mxu0 %v112
    %v784 = vpop.f32.mrb[0].mxu0
    %v785 = vadd.f32 0.0, %v784
    %v786 = vpop.f32.mrb[0].mxu0
    %787 = vmatprep.mubr.f32.mxu0 0.0
    %788 = vmatmul.mubr.f32.gmra.mrb[0].mxu0 %v113
    %v789 = vpop.f32.mrb[0].mxu0
    %v790 = vadd.f32 0.0, %v789
    %v791 = vpop.f32.mrb[0].mxu0
    %792 = vmatprep.mubr.f32.mxu0 0.0
    %793 = vmatmul.mubr.f32.gmra.mrb[0].mxu0 %v114
    %v794 = vpop.f32.mrb[0].mxu0
    %v795 = vadd.f32 0.0, %v794
    %v796 = vpop.f32.mrb[0].mxu0
    %797 = vmatprep.mubr.f32.mxu0 0.0
    %798 = vmatmul.mubr.f32.gmra.mrb[0].mxu0 %v115
    %v799 = vpop.f32.mrb[0].mxu0
    %v800 = vadd.f32 0.0, %v799
    %v801 = vpop.f32.mrb[0].mxu0
    %802 = vmatprep.mubr.f32.mxu0 0.0
    %803 = vmatmul.mubr.f32.gmra.mrb[0].mxu0 %v116
    %v804 = vpop.f32.mrb[0].mxu0
    %v805 = vadd.f32 0.0, %v804
    %v806 = vpop.f32.mrb[0].mxu0
    %807 = vmatprep.mubr.f32.mxu0 0.0
    %808 = vmatmul.mubr.f32.gmra.mrb[0].mxu0 %v117
    %v809 = vpop.f32.mrb[0].mxu0
    %v810 = vadd.f32 0.0, %v809
    %v811 = vpop.f32.mrb[0].mxu0
    %812 = vmatprep.mubr.f32.mxu0 0.0
    %813 = vmatmul.mubr.f32.gmra.mrb[0].mxu0 %v118
    %v814 = vpop.f32.mrb[0].mxu0
    %v815 = vadd.f32 0.0, %v814
    %v816 = vpop.f32.mrb[0].mxu0
    %817 = vmatprep.mubr.f32.mxu0 0.0
    %818 = vmatmul.mubr.f32.gmra.mrb[0].mxu0 %v119
    %v819 = vpop.f32.mrb[0].mxu0
    %v820 = vadd.f32 0.0, %v819
    %v821 = vpop.f32.mrb[0].mxu0
    %822 = vmatprep.mubr.f32.mxu0 0.0
    %823 = vmatmul.mubr.f32.gmra.mrb[0].mxu0 %v120
    %v824 = vpop.f32.mrb[0].mxu0
    %v825 = vadd.f32 0.0, %v824
    %v826 = vpop.f32.mrb[0].mxu0
    %827 = vmatprep.mubr.f32.mxu0 0.0
    %828 = vmatmul.mubr.f32.gmra.mrb[0].mxu0 %v121
    %v829 = vpop.f32.mrb[0].mxu0
    %v830 = vadd.f32 0.0, %v829
    %v831 = vpop.f32.mrb[0].mxu0
    %832 = vmatprep.mubr.f32.mxu0 0.0
    %833 = vmatmul.mubr.f32.gmra.mrb[0].mxu0 %v122
    %v834 = vpop.f32.mrb[0].mxu0
    %v835 = vadd.f32 0.0, %v834
    %v836 = vpop.f32.mrb[0].mxu0
    %837 = vmatprep.mubr.f32.mxu0 0.0
    %838 = vmatmul.mubr.f32.gmra.mrb[0].mxu0 %v123
    %v839 = vpop.f32.mrb[0].mxu0
    %v840 = vadd.f32 0.0, %v839
    %v841 = vpop.f32.mrb[0].mxu0
    %842 = vmatprep.mubr.f32.mxu0 0.0
    %843 = vmatmul.mubr.f32.gmra.mrb[0].mxu0 %v124
    %v844 = vpop.f32.mrb[0].mxu0
    %v845 = vadd.f32 0.0, %v844
    %v846 = vpop.f32.mrb[0].mxu0
    %847 = vmatprep.mubr.f32.mxu0 0.0
    %848 = vmatmul.mubr.f32.gmra.mrb[0].mxu0 %v125
    %v849 = vpop.f32.mrb[0].mxu0
    %v850 = vadd.f32 0.0, %v849
    %v851 = vpop.f32.mrb[0].mxu0
    %852 = vmatprep.mubr.f32.mxu0 0.0
    %853 = vmatmul.mubr.f32.gmra.mrb[0].mxu0 %v126
    %v854 = vpop.f32.mrb[0].mxu0
    %v855 = vadd.f32 0.0, %v854
    %v856 = vpop.f32.mrb[0].mxu0
    %857 = vmatprep.mubr.f32.mxu0 0.0
    %858 = vmatmul.mubr.f32.gmra.mrb[0].mxu0 %v127
    %v859 = vpop.f32.mrb[0].mxu0
    %v860 = vadd.f32 0.0, %v859
    %v861 = vpop.f32.mrb[0].mxu0
    %862 = vmatprep.mubr.f32.mxu0 0.0
    %863 = vmatmul.mubr.f32.gmra.mrb[0].mxu0 %v128
    %v864 = vpop.f32.mrb[0].mxu0
    %v865 = vadd.f32 0.0, %v864
    %v866 = vpop.f32.mrb[0].mxu0
    %867 = vmatprep.mubr.f32.mxu0 0.0
    %868 = vmatmul.mubr.f32.gmra.mrb[0].mxu0 %v129
    %v869 = vpop.f32.mrb[0].mxu0
    %v870 = vadd.f32 0.0, %v869
    %v871 = vpop.f32.mrb[0].mxu0
    %872 = vmatprep.mubr.f32.mxu0 0.0
    %873 = vmatmul.mubr.f32.gmra.mrb[0].mxu0 %v130
    %v874 = vpop.f32.mrb[0].mxu0
    %v875 = vadd.f32 0.0, %v874
    %v876 = vpop.f32.mrb[0].mxu0
    %877 = vmatprep.mubr.f32.mxu0 0.0
    %878 = vmatmul.mubr.f32.gmra.mrb[0].mxu0 %v131
    %v879 = vpop.f32.mrb[0].mxu0
    %v880 = vadd.f32 0.0, %v879
    %v881 = vpop.f32.mrb[0].mxu0
    %882 = vmatprep.mubr.f32.mxu0 0.0
    %883 = vmatmul.mubr.f32.gmra.mrb[0].mxu0 %v132
    %v884 = vpop.f32.mrb[0].mxu0
    %v885 = vadd.f32 0.0, %v884
    %v886 = vpop.f32.mrb[0].mxu0
    %887 = vmatprep.mubr.f32.mxu0 0.0
    %888 = vmatmul.mubr.f32.gmra.mrb[0].mxu0 %v133
    %v889 = vpop.f32.mrb[0].mxu0
    %v890 = vadd.f32 0.0, %v889
    %v891 = vpop.f32.mrb[0].mxu0
    %892 = vmatprep.mubr.f32.mxu0 0.0
    %893 = vmatmul.mubr.f32.gmra.mrb[0].mxu0 %v134
    %v894 = vpop.f32.mrb[0].mxu0
    %v895 = vadd.f32 0.0, %v894
    %v896 = vpop.f32.mrb[0].mxu0
    %897 = vmatprep.mubr.f32.mxu0 0.0
    %898 = vmatmul.mubr.f32.gmra.mrb[0].mxu0 %v135
    %v899 = vpop.f32.mrb[0].mxu0
    %v900 = vadd.f32 0.0, %v899
    %v901 = vpop.f32.mrb[0].mxu0
    %902 = vmatprep.mubr.f32.mxu0 0.0
    %903 = vmatmul.mubr.f32.gmra.mrb[0].mxu0 %v136
    %v904 = vpop.f32.mrb[0].mxu0
    %v905 = vadd.f32 0.0, %v904
    %v906 = vpop.f32.mrb[0].mxu0
    %907 = vdwg.mxu0
    %v908 = vadd.f32 %v153, %v750
    %v909 = vadd.f32 %v154, %v755
    %v910 = vadd.f32 %v155, %v760
    %v911 = vadd.f32 %v156, %v765
    %v912 = vadd.f32 %v157, %v770
    %v913 = vadd.f32 %v158, %v775
    %v914 = vadd.f32 %v159, %v780
    %v915 = vadd.f32 %v160, %v785
    %v916 = vadd.f32 %v161, %v790
    %v917 = vadd.f32 %v162, %v795
    %v918 = vadd.f32 %v163, %v800
    %v919 = vadd.f32 %v164, %v805
    %v920 = vadd.f32 %v165, %v810
    %v921 = vadd.f32 %v166, %v815
    %v922 = vadd.f32 %v167, %v820
    %v923 = vadd.f32 %v168, %v825
    %v924 = vadd.f32 %v169, %v830
    %v925 = vadd.f32 %v170, %v835
    %v926 = vadd.f32 %v171, %v840
    %v927 = vadd.f32 %v172, %v845
    %v928 = vadd.f32 %v173, %v850
    %v929 = vadd.f32 %v174, %v855
    %v930 = vadd.f32 %v175, %v860
    %v931 = vadd.f32 %v176, %v865
    %v932 = vadd.f32 %v177, %v870
    %v933 = vadd.f32 %v178, %v875
    %v934 = vadd.f32 %v179, %v880
    %v935 = vadd.f32 %v180, %v885
    %v936 = vadd.f32 %v181, %v890
    %v937 = vadd.f32 %v182, %v895
    %v938 = vadd.f32 %v183, %v900
    %v939 = vadd.f32 %v184, %v905
    %940 = vst [vmem:[#allocation10] sm:$0xff] %v908
    %941 = vst [vmem:[#allocation10 + $0x8] sm:$0xff] %v909
    %942 = vst [vmem:[#allocation10 + $0x10] sm:$0xff] %v910
    %943 = vst [vmem:[#allocation10 + $0x18] sm:$0xff] %v911
    %944 = vst [vmem:[#allocation10 + $0x20] sm:$0xff] %v912
    %945 = vst [vmem:[#allocation10 + $0x28] sm:$0xff] %v913
    %946 = vst [vmem:[#allocation10 + $0x30] sm:$0xff] %v914
    %947 = vst [vmem:[#allocation10 + $0x38] sm:$0xff] %v915
    %948 = vst [vmem:[#allocation10 + $0x40] sm:$0xff] %v916
    %949 = vst [vmem:[#allocation10 + $0x48] sm:$0xff] %v917
    %950 = vst [vmem:[#allocation10 + $0x50] sm:$0xff] %v918
    %951 = vst [vmem:[#allocation10 + $0x58] sm:$0xff] %v919
    %952 = vst [vmem:[#allocation10 + $0x60] sm:$0xff] %v920
    %953 = vst [vmem:[#allocation10 + $0x68] sm:$0xff] %v921
    %954 = vst [vmem:[#allocation10 + $0x70] sm:$0xff] %v922
    %955 = vst [vmem:[#allocation10 + $0x78] sm:$0xff] %v923
    %956 = vst [vmem:[#allocation10 + $0x80] sm:$0xff] %v924
    %957 = vst [vmem:[#allocation10 + $0x88] sm:$0xff] %v925
    %958 = vst [vmem:[#allocation10 + $0x90] sm:$0xff] %v926
    %959 = vst [vmem:[#allocation10 + $0x98] sm:$0xff] %v927
    %960 = vst [vmem:[#allocation10 + $0xa0] sm:$0xff] %v928
    %961 = vst [vmem:[#allocation10 + $0xa8] sm:$0xff] %v929
    %962 = vst [vmem:[#allocation10 + $0xb0] sm:$0xff] %v930
    %963 = vst [vmem:[#allocation10 + $0xb8] sm:$0xff] %v931
    %964 = vst [vmem:[#allocation10 + $0xc0] sm:$0xff] %v932
    %965 = vst [vmem:[#allocation10 + $0xc8] sm:$0xff] %v933
    %966 = vst [vmem:[#allocation10 + $0xd0] sm:$0xff] %v934
    %967 = vst [vmem:[#allocation10 + $0xd8] sm:$0xff] %v935
    %968 = vst [vmem:[#allocation10 + $0xe0] sm:$0xff] %v936
    %969 = vst [vmem:[#allocation10 + $0xe8] sm:$0xff] %v937
    %970 = vst [vmem:[#allocation10 + $0xf0] sm:$0xff] %v938
    %971 = vst [vmem:[#allocation10 + $0xf8] sm:$0xff] %v939
    // Predicated region
    $region34: #{tpu_custom_call.1} parent=1 // pred_check
      _
    $region35: #{tpu_custom_call.1} parent=1 // pred_check_branch
      %973 = sbr.rel (0) target = $region37
    $region36: #{tpu_custom_call.1} parent=1 // pred_region
      %s975 = ssub.s32 4096, 4096
      %976 = vsyncadd [#allocation4], %s975
      %s977 = sshll.u32 [#allocation10], 4
      %s978 = int_to_ptr.vmem [resolvable:$true] %s977
      %983 = dma.vmem_to_hbm [thread:$0]  %s978, 4096, %s4, [#allocation4], 128, 128, 8
    $region37: #{tpu_custom_call.1} parent=1 // pred_fallthru
      _
    // Predicated region
    $region38: #{tpu_custom_call.1} parent=1 // pred_check
      _
    $region39: #{tpu_custom_call.1} parent=1 // pred_check_branch
      %985 = sbr.rel (0) target = $region41
    $region40: #{tpu_custom_call.1} parent=1 // pred_region
      %986 = dma.done [#allocation4], 4096
    $region41: #{tpu_custom_call.1} parent=1 // pred_fallthru
      _
    %987 = vsyncpa [#allocation3], 1
    %988 = vsyncpa [#allocation6], 1
    %989 = vsyncpa [#allocation9], 1
    %990 = vsyncpa [#allocation4], 1

</llo_original>
